<compile_context>
chip_gen: v5e
topology: v5e:2x2
jax: 0.10.0
libtpu: 0.0.40
codegen_flags: <defaults>
</compile_context>

<pallas_src>
import functools

import jax
import jax.numpy as jnp
from jax.experimental import pallas as pl
from jax.experimental.pallas import tpu as pltpu


def _round_up(x, m):
    return ((x + m - 1) // m) * m


def _num_tensorcores():
    """2 TensorCores per chip on v7x, 1 on v5e/v6e."""
    try:
        kind = jax.devices()[0].device_kind.lower()
    except Exception:
        return 1
    return 2 if "v7" in kind else 1


# --------------------------------- kernel ---------------------------------

def _net_kernel(x_ref, win_ref, w_ref, b_ref, out_ref, *, hpad, compute_dtype):
    """One batch tile of the full 8-layer forward pass, all weights VMEM-resident.

    x_ref:   (TB, F_pad)      f32
    win_ref: (F_pad, 2*HPAD)  compute_dtype   -- [W1 | W5b] fused
    w_ref:   (7*HPAD, HPAD)   compute_dtype   -- W2,W3,W4,W5a,W6,W7,W8 stacked
    b_ref:   (8, HPAD)        f32             -- biases b1..b8
    out_ref: (TB, HPAD)       f32
    """
    x0 = x_ref[...].astype(compute_dtype)      # hoisted: cast the input tile once
    b = b_ref[...]                              # tiny f32 bias slab, loaded once

    def mm(h, w):
        return jnp.dot(h, w, preferred_element_type=jnp.float32)

    def wblk(l):                                # static, tile-aligned slab view
        return w_ref[l * hpad:(l + 1) * hpad, :]

    def bias(l):                                # (1, HPAD) f32, broadcasts over rows
        return b[l:l + 1, :]

    relu = lambda v: jnp.maximum(v, 0.0)
    cast = lambda v: v.astype(compute_dtype)

    # Fused first-layer + skip matmul: x0 @ [W1 | W5b].  One MXU pass yields both
    # the layer-1 pre-activation and the layer-5 skip branch (this replaces the
    # lane-axis concat of the original concat(x4, x_input) @ W5).
    z = mm(x0, win_ref[...])                    # (TB, 2*HPAD) f32
    z1, skip = z[:, :hpad], z[:, hpad:]         # lane-aligned (multiple-of-128) splits

    h = cast(relu(z1 + bias(0)))                         # layer 1
    h = cast(relu(mm(h, wblk(0)) + bias(1)))             # layer 2
    h = cast(relu(mm(h, wblk(1)) + bias(2)))             # layer 3
    h = cast(relu(mm(h, wblk(2)) + bias(3)))             # layer 4
    h = cast(relu(mm(h, wblk(3)) + skip + bias(4)))      # layer 5: x4@W5a + x0@W5b
    h = cast(relu(mm(h, wblk(4)) + bias(5)))             # layer 6
    h = cast(relu(mm(h, wblk(5)) + bias(6)))             # layer 7
    out_ref[...] = jnp.tanh(mm(h, wblk(6)) + bias(7))    # layer 8 + tanh


# --------------------------------- wrapper --------------------------------

def net_forward(x, params, *, compute_dtype=jnp.bfloat16, tile_batch=None):
    """x: (B, F) float32.  params: list of (W_t, b_row); W_t: (in, out),
    b_row: (1, out) — PyTorch weights pre-transposed for x @ W_t matmuls."""
    batch, num_features = x.shape
    num_output = params[-1][0].shape[1]

    (w1, b1), (w2, b2), (w3, b3), (w4, b4), (w5, b5), (w6, b6), (w7, b7), (w8, b8) = params

    # Split W5 along its input dim to remove the concat:
    # rows [:nh3-F] multiply x4, rows [nh3-F:] multiply x_input.
    nh3_minus_f = w4.shape[1]
    w5a, w5b = w5[:nh3_minus_f, :], w5[nh3_minus_f:, :]

    # Common padded width: every hidden activation is a (TB, HPAD) tile with zero
    # columns past the true layer width (ReLU(0)=0, tanh(0)=0, and the matching
    # zero weight rows keep downstream layers exact).
    widths = [w.shape[1] for w in (w1, w2, w3, w4, w5, w6, w7, w8)]
    hpad = _round_up(max(widths), 128)
    f_pad = _round_up(num_features, 8)

    def pad2(a, rows, cols):
        return jnp.pad(a, ((0, rows - a.shape[0]), (0, cols - a.shape[1])))

    cd = compute_dtype
    # Resident slab 1: fused first-layer + skip weights  [W1 | W5b]  (F_pad, 2*HPAD)
    win = jnp.concatenate([pad2(w1, f_pad, hpad), pad2(w5b, f_pad, hpad)],
                          axis=1).astype(cd)
    # Resident slab 2: layers 2..8, each padded to (HPAD, HPAD), stacked on rows
    # (block starts are multiples of HPAD >= 128 -> tile-aligned static views).
    w_slab = jnp.concatenate(
        [pad2(w, hpad, hpad) for w in (w2, w3, w4, w5a, w6, w7, w8)],
        axis=0).astype(cd)
    # Resident slab 3: all 8 biases as one (8, HPAD) f32 array (one tiny DMA).
    b_slab = jnp.concatenate(
        [pad2(b, 1, hpad) for b in (b1, b2, b3, b4, b5, b6, b7, b8)],
        axis=0).astype(jnp.float32)

    # --- batch tiling: minimum number of grid steps, one per TensorCore -------
    num_cores = _num_tensorcores()
    max_tile = 4096                       # keeps per-step VMEM ~20 MiB worst case
    if tile_batch is None:
        tile_batch = min(max_tile, max(8, _round_up(pl.cdiv(batch, num_cores), 8)))
        num_tiles = num_cores * pl.cdiv(batch, tile_batch * num_cores)
    else:
        tile_batch = _round_up(int(tile_batch), 8)
        num_tiles = pl.cdiv(batch, tile_batch)
    b_pad = num_tiles * tile_batch

    xp = jnp.pad(x, ((0, b_pad - batch), (0, f_pad - num_features)))

    # --- specs -----------------------------------------------------------------
    def resident(a):
        # Full-array block + constant index map: DMA'd once, VMEM-resident.
        return pl.BlockSpec(a.shape, lambda i: (0, 0))

    in_specs = [pl.BlockSpec((tile_batch, f_pad), lambda i: (i, 0)),
                resident(win), resident(w_slab), resident(b_slab)]
    out_specs = pl.BlockSpec((tile_batch, hpad), lambda i: (i, 0))

    # --- VMEM limit (explicit so a large tile never hits the scoped default) ---
    slab_bytes = sum(int(a.size) * a.dtype.itemsize for a in (win, w_slab, b_slab))
    io_bytes = 2 * tile_batch * (f_pad + hpad) * 4          # double-buffered in/out
    act_bytes = 8 * tile_batch * hpad * 4                   # live f32 activation margin
    vmem_limit = int(min(48 << 20, max(32 << 20, 2 * (slab_bytes + io_bytes + act_bytes))))

    # --- cost estimate ----------------------------------------------------------
    flops = int(2 * b_pad * sum(w.shape[0] * w.shape[1]
                                for w in (w1, w2, w3, w4, w5, w6, w7, w8)))
    cost = pl.CostEstimate(flops=flops,
                           transcendentals=int(b_pad * num_output),
                           bytes_accessed=int(b_pad * (f_pad + hpad) * 4) + slab_bytes)

    kernel = functools.partial(_net_kernel, hpad=hpad, compute_dtype=cd)

    out = pl.pallas_call(
        kernel,
        out_shape=jax.ShapeDtypeStruct((b_pad, hpad), jnp.float32),
        grid=(num_tiles,),
        in_specs=in_specs,
        out_specs=out_specs,
        compiler_params=pltpu.CompilerParams(
            # "parallel" lets the runtime shard the batch axis over the 2 TCs on
            # v7x (grid is kept a multiple of num_cores); no-op on v5e/v6e.
            dimension_semantics=("parallel",),
            vmem_limit_bytes=vmem_limit),
        cost_estimate=cost,
    )(xp, win, w_slab, b_slab)

    return out[:batch, :num_output]


# ------------------------------ parameter init ------------------------------

def kaiming_normal(key, out_dim, in_dim):
    # torch.nn.init.kaiming_normal_ default: fan_in mode, gain = sqrt(2).
    std = jnp.sqrt(2.0 / in_dim)
    return jax.random.normal(key, (out_dim, in_dim), dtype=jnp.float32) * std


def make_params(key, num_features, num_hidden_units, num_output):
    """Deterministic re-implementation of Net.__init__ parameter shapes."""
    nh = num_hidden_units
    # Note: the PyTorch module sizes W8's input from nh[7] while the tensor
    # feeding it has width nh[6]; the module is only consistent when they match.
    assert nh[6] == nh[7], "Net requires num_hidden_units[6] == num_hidden_units[7]"
    assert nh[3] > num_features, "Net requires num_hidden_units[3] > num_features"
    layer_dims = [
        (nh[0], num_features),
        (nh[1], nh[0]),
        (nh[2], nh[1]),
        (nh[3] - num_features, nh[2]),
        (nh[4], nh[3]),
        (nh[5], nh[4]),
        (nh[6], nh[5]),
        (num_output, nh[7]),
    ]
    keys = jax.random.split(key, len(layer_dims))
    params = []
    for k, (out_d, in_d) in zip(keys, layer_dims):
        w = kaiming_normal(k, out_d, in_d)          # PyTorch layout (out, in)
        b = jnp.zeros((out_d,), dtype=jnp.float32)  # init.constant_(..., 0)
        params.append((w.T, b.reshape(1, out_d)))   # pre-transposed for kernel
    return params


def reference_forward(x, params):
    """Pure-JAX reference matching the PyTorch forward() exactly."""
    h = x
    x0 = x
    for i, (w_t, b) in enumerate(params):
        if i == 4:
            h = jnp.concatenate([h, x0], axis=1)
        z = h @ w_t + b
        h = jnp.tanh(z) if i == len(params) - 1 else jnp.maximum(z, 0.0)
    return h


if __name__ == "__main__":
    num_features = 8
    num_hidden_units = [32, 32, 32, 40, 32, 32, 32, 32]   # nh[3]-F = 32, nh[7]==nh[6]
    num_output = 4
    batch = 64

    key = jax.random.PRNGKey(0)
    k_params, k_x = jax.random.split(key)
    params = make_params(k_params, num_features, num_hidden_units, num_output)
    x = jax.random.normal(k_x, (batch, num_features), dtype=jnp.float32)

    ref = reference_forward(x, params)

    # f32 MXU-input path: exactness check (valid on every generation).
    out_f32 = jax.block_until_ready(net_forward(x, params, compute_dtype=jnp.float32))
    assert out_f32.shape == (batch, num_output)
    assert jnp.allclose(out_f32, ref, atol=1e-4, rtol=1e-4)

    # Default path: bf16 MXU inputs (native MXU dtype on v5e/v6e/v7x), f32
    # accumulation + f32 bias/ReLU/tanh.  Loose tolerance vs the f32 reference.
    out_bf16 = jax.block_until_ready(net_forward(x, params))
    assert out_bf16.shape == (batch, num_output)
    assert jnp.allclose(out_bf16, ref, atol=1e-1, rtol=1e-1)

    print("KERNEL_OK")
</pallas_src>

<mosaic_0001>
module attributes {stable_mosaic.version = 11 : i64} {
  func.func @_net_kernel(%arg0: i32, %arg1: memref<64x8xf32, #tpu.memory_space<vmem>>, %arg2: memref<8x256xf32, #tpu.memory_space<vmem>>, %arg3: memref<896x128xf32, #tpu.memory_space<vmem>>, %arg4: memref<8x128xf32, #tpu.memory_space<vmem>>, %arg5: memref<64x128xf32, #tpu.memory_space<vmem>>) attributes {dimension_semantics = [#tpu.dimension_semantics<parallel>], iteration_bounds = array<i64: 1>, scalar_prefetch = 0 : i64, scratch_operands = 0 : i64, tpu.core_type = #tpu.core_type<tc>, window_params = [{transform_indices = @transform_0, window_bounds = array<i64: 64, 8>}, {pipeline_mode = #tpu.pipeline_mode<synchronous>, transform_indices = @transform_1, window_bounds = array<i64: 8, 256>}, {pipeline_mode = #tpu.pipeline_mode<synchronous>, transform_indices = @transform_2, window_bounds = array<i64: 896, 128>}, {pipeline_mode = #tpu.pipeline_mode<synchronous>, transform_indices = @transform_3, window_bounds = array<i64: 8, 128>}, {transform_indices = @transform_4, window_bounds = array<i64: 64, 128>}]} {
    %c0 = arith.constant 0 : index
    %c0_0 = arith.constant 0 : index
    %0 = vector.load %arg1[%c0, %c0_0] : memref<64x8xf32, #tpu.memory_space<vmem>>, vector<64x8xf32>
    %c0_1 = arith.constant 0 : index
    %c0_2 = arith.constant 0 : index
    %1 = vector.load %arg4[%c0_1, %c0_2] : memref<8x128xf32, #tpu.memory_space<vmem>>, vector<8x128xf32>
    %c0_3 = arith.constant 0 : index
    %c0_4 = arith.constant 0 : index
    %2 = vector.load %arg2[%c0_3, %c0_4] : memref<8x256xf32, #tpu.memory_space<vmem>>, vector<8x256xf32>
    %cst = arith.constant dense<0.000000e+00> : vector<64x256xf32>
    %3 = tpu.matmul %0, %2, %cst {dimension_numbers = #tpu.dot_dimension_numbers<[1], [0], [0], [1], [0, 0, 1, 1], [], []>} : vector<64x8xf32>, vector<8x256xf32>, vector<64x256xf32> -> vector<64x256xf32>
    %4 = vector.extract_strided_slice %3 {offsets = [0, 0], sizes = [64, 128], strides = [1, 1]} : vector<64x256xf32> to vector<64x128xf32>
    %5 = vector.extract_strided_slice %3 {offsets = [0, 128], sizes = [64, 128], strides = [1, 1]} : vector<64x256xf32> to vector<64x128xf32>
    %6 = vector.extract_strided_slice %1 {offsets = [0, 0], sizes = [1, 128], strides = [1, 1]} : vector<8x128xf32> to vector<1x128xf32>
    %7 = vector.broadcast %6 : vector<1x128xf32> to vector<64x128xf32>
    %8 = arith.addf %4, %7 : vector<64x128xf32>
    %cst_5 = arith.constant 0.000000e+00 : f32
    %9 = vector.broadcast %cst_5 : f32 to vector<64x128xf32>
    %10 = arith.maximumf %8, %9 : vector<64x128xf32>
    %c0_6 = arith.constant 0 : index
    %c0_7 = arith.constant 0 : index
    %11 = vector.load %arg3[%c0_6, %c0_7] : memref<896x128xf32, #tpu.memory_space<vmem>>, vector<128x128xf32>
    %cst_8 = arith.constant dense<0.000000e+00> : vector<64x128xf32>
    %12 = tpu.matmul %10, %11, %cst_8 {dimension_numbers = #tpu.dot_dimension_numbers<[1], [0], [0], [1], [0, 0, 1, 1], [], []>} : vector<64x128xf32>, vector<128x128xf32>, vector<64x128xf32> -> vector<64x128xf32>
    %13 = vector.extract_strided_slice %1 {offsets = [1, 0], sizes = [1, 128], strides = [1, 1]} : vector<8x128xf32> to vector<1x128xf32>
    %14 = vector.broadcast %13 : vector<1x128xf32> to vector<64x128xf32>
    %15 = arith.addf %12, %14 : vector<64x128xf32>
    %cst_9 = arith.constant 0.000000e+00 : f32
    %16 = vector.broadcast %cst_9 : f32 to vector<64x128xf32>
    %17 = arith.maximumf %15, %16 : vector<64x128xf32>
    %c128 = arith.constant 128 : index
    %c0_10 = arith.constant 0 : index
    %18 = vector.load %arg3[%c128, %c0_10] : memref<896x128xf32, #tpu.memory_space<vmem>>, vector<128x128xf32>
    %cst_11 = arith.constant dense<0.000000e+00> : vector<64x128xf32>
    %19 = tpu.matmul %17, %18, %cst_11 {dimension_numbers = #tpu.dot_dimension_numbers<[1], [0], [0], [1], [0, 0, 1, 1], [], []>} : vector<64x128xf32>, vector<128x128xf32>, vector<64x128xf32> -> vector<64x128xf32>
    %20 = vector.extract_strided_slice %1 {offsets = [2, 0], sizes = [1, 128], strides = [1, 1]} : vector<8x128xf32> to vector<1x128xf32>
    %21 = vector.broadcast %20 : vector<1x128xf32> to vector<64x128xf32>
    %22 = arith.addf %19, %21 : vector<64x128xf32>
    %cst_12 = arith.constant 0.000000e+00 : f32
    %23 = vector.broadcast %cst_12 : f32 to vector<64x128xf32>
    %24 = arith.maximumf %22, %23 : vector<64x128xf32>
    %c256 = arith.constant 256 : index
    %c0_13 = arith.constant 0 : index
    %25 = vector.load %arg3[%c256, %c0_13] : memref<896x128xf32, #tpu.memory_space<vmem>>, vector<128x128xf32>
    %cst_14 = arith.constant dense<0.000000e+00> : vector<64x128xf32>
    %26 = tpu.matmul %24, %25, %cst_14 {dimension_numbers = #tpu.dot_dimension_numbers<[1], [0], [0], [1], [0, 0, 1, 1], [], []>} : vector<64x128xf32>, vector<128x128xf32>, vector<64x128xf32> -> vector<64x128xf32>
    %27 = vector.extract_strided_slice %1 {offsets = [3, 0], sizes = [1, 128], strides = [1, 1]} : vector<8x128xf32> to vector<1x128xf32>
    %28 = vector.broadcast %27 : vector<1x128xf32> to vector<64x128xf32>
    %29 = arith.addf %26, %28 : vector<64x128xf32>
    %cst_15 = arith.constant 0.000000e+00 : f32
    %30 = vector.broadcast %cst_15 : f32 to vector<64x128xf32>
    %31 = arith.maximumf %29, %30 : vector<64x128xf32>
    %c384 = arith.constant 384 : index
    %c0_16 = arith.constant 0 : index
    %32 = vector.load %arg3[%c384, %c0_16] : memref<896x128xf32, #tpu.memory_space<vmem>>, vector<128x128xf32>
    %cst_17 = arith.constant dense<0.000000e+00> : vector<64x128xf32>
    %33 = tpu.matmul %31, %32, %cst_17 {dimension_numbers = #tpu.dot_dimension_numbers<[1], [0], [0], [1], [0, 0, 1, 1], [], []>} : vector<64x128xf32>, vector<128x128xf32>, vector<64x128xf32> -> vector<64x128xf32>
    %34 = arith.addf %33, %5 : vector<64x128xf32>
    %35 = vector.extract_strided_slice %1 {offsets = [4, 0], sizes = [1, 128], strides = [1, 1]} : vector<8x128xf32> to vector<1x128xf32>
    %36 = vector.broadcast %35 : vector<1x128xf32> to vector<64x128xf32>
    %37 = arith.addf %34, %36 : vector<64x128xf32>
    %cst_18 = arith.constant 0.000000e+00 : f32
    %38 = vector.broadcast %cst_18 : f32 to vector<64x128xf32>
    %39 = arith.maximumf %37, %38 : vector<64x128xf32>
    %c512 = arith.constant 512 : index
    %c0_19 = arith.constant 0 : index
    %40 = vector.load %arg3[%c512, %c0_19] : memref<896x128xf32, #tpu.memory_space<vmem>>, vector<128x128xf32>
    %cst_20 = arith.constant dense<0.000000e+00> : vector<64x128xf32>
    %41 = tpu.matmul %39, %40, %cst_20 {dimension_numbers = #tpu.dot_dimension_numbers<[1], [0], [0], [1], [0, 0, 1, 1], [], []>} : vector<64x128xf32>, vector<128x128xf32>, vector<64x128xf32> -> vector<64x128xf32>
    %42 = vector.extract_strided_slice %1 {offsets = [5, 0], sizes = [1, 128], strides = [1, 1]} : vector<8x128xf32> to vector<1x128xf32>
    %43 = vector.broadcast %42 : vector<1x128xf32> to vector<64x128xf32>
    %44 = arith.addf %41, %43 : vector<64x128xf32>
    %cst_21 = arith.constant 0.000000e+00 : f32
    %45 = vector.broadcast %cst_21 : f32 to vector<64x128xf32>
    %46 = arith.maximumf %44, %45 : vector<64x128xf32>
    %c640 = arith.constant 640 : index
    %c0_22 = arith.constant 0 : index
    %47 = vector.load %arg3[%c640, %c0_22] : memref<896x128xf32, #tpu.memory_space<vmem>>, vector<128x128xf32>
    %cst_23 = arith.constant dense<0.000000e+00> : vector<64x128xf32>
    %48 = tpu.matmul %46, %47, %cst_23 {dimension_numbers = #tpu.dot_dimension_numbers<[1], [0], [0], [1], [0, 0, 1, 1], [], []>} : vector<64x128xf32>, vector<128x128xf32>, vector<64x128xf32> -> vector<64x128xf32>
    %49 = vector.extract_strided_slice %1 {offsets = [6, 0], sizes = [1, 128], strides = [1, 1]} : vector<8x128xf32> to vector<1x128xf32>
    %50 = vector.broadcast %49 : vector<1x128xf32> to vector<64x128xf32>
    %51 = arith.addf %48, %50 : vector<64x128xf32>
    %cst_24 = arith.constant 0.000000e+00 : f32
    %52 = vector.broadcast %cst_24 : f32 to vector<64x128xf32>
    %53 = arith.maximumf %51, %52 : vector<64x128xf32>
    %c768 = arith.constant 768 : index
    %c0_25 = arith.constant 0 : index
    %54 = vector.load %arg3[%c768, %c0_25] : memref<896x128xf32, #tpu.memory_space<vmem>>, vector<128x128xf32>
    %cst_26 = arith.constant dense<0.000000e+00> : vector<64x128xf32>
    %55 = tpu.matmul %53, %54, %cst_26 {dimension_numbers = #tpu.dot_dimension_numbers<[1], [0], [0], [1], [0, 0, 1, 1], [], []>} : vector<64x128xf32>, vector<128x128xf32>, vector<64x128xf32> -> vector<64x128xf32>
    %56 = vector.extract_strided_slice %1 {offsets = [7, 0], sizes = [1, 128], strides = [1, 1]} : vector<8x128xf32> to vector<1x128xf32>
    %57 = vector.broadcast %56 : vector<1x128xf32> to vector<64x128xf32>
    %58 = arith.addf %55, %57 : vector<64x128xf32>
    %59 = math.tanh %58 : vector<64x128xf32>
    %c0_27 = arith.constant 0 : index
    %c0_28 = arith.constant 0 : index
    %60 = vector.load %arg5[%c0_27, %c0_28] : memref<64x128xf32, #tpu.memory_space<vmem>>, vector<64x128xf32>
    tpu.vector_store %arg5[%c0_27, %c0_28], %59 {strides = array<i32>} : memref<64x128xf32, #tpu.memory_space<vmem>>, vector<64x128xf32>,
    return
  }
  func.func @transform_0(%arg0: i32) -> (i32, i32) {
    %c0_i32 = arith.constant 0 : i32
    %c0_i32_0 = arith.constant 0 : i32
    return %arg0, %c0_i32 : i32, i32
  }
  func.func @transform_1(%arg0: i32) -> (i32, i32) {
    %c0_i32 = arith.constant 0 : i32
    %c0_i32_0 = arith.constant 0 : i32
    %c0_i32_1 = arith.constant 0 : i32
    return %c0_i32, %c0_i32_0 : i32, i32
  }
  func.func @transform_2(%arg0: i32) -> (i32, i32) {
    %c0_i32 = arith.constant 0 : i32
    %c0_i32_0 = arith.constant 0 : i32
    %c0_i32_1 = arith.constant 0 : i32
    return %c0_i32, %c0_i32_0 : i32, i32
  }
  func.func @transform_3(%arg0: i32) -> (i32, i32) {
    %c0_i32 = arith.constant 0 : i32
    %c0_i32_0 = arith.constant 0 : i32
    %c0_i32_1 = arith.constant 0 : i32
    return %c0_i32, %c0_i32_0 : i32, i32
  }
  func.func @transform_4(%arg0: i32) -> (i32, i32) {
    %c0_i32 = arith.constant 0 : i32
    %c0_i32_0 = arith.constant 0 : i32
    return %arg0, %c0_i32 : i32, i32
  }
}

</mosaic_0001>

<llo_original>
// kernel: tpu_custom_call.1
$region0: #{tpu_custom_call.1}
  #allocation0 [shape = 'u32[]', space=smem, size = 0x4, offset = 0x4, fixed_abs, tag = 'smem constant byte address 0x4 - core index']
  #allocation1 [shape = 'u32[72,128]{1,0:T(1,128)}', space=vmem, size = 0x9000, scoped, tag = 'internal scratch']
  %s0 = inlined_call_operand.vmem [shape: f32[64,8], index: 0, kind: input, shape index: {}]
  %s1 = inlined_call_operand.vmem [shape: f32[8,256], index: 1, kind: input, shape index: {}]
  %s2 = inlined_call_operand.hbm [shape: f32[896,128], index: 2, kind: input, shape index: {}]
  %s3 = inlined_call_operand.vmem [shape: f32[8,128], index: 3, kind: input, shape index: {}]
  %s4 = inlined_call_operand.hbm [shape: f32[64,128], index: 4, kind: output, shape index: {}]
  %s5 = sld [smem:[#allocation0]]
  $region30: #{tpu_custom_call.1} parent=0
    _
  %s7 = ssub.s32 1, %s5
  %s8 = scalar_select 0, %s7, %s5
  $region1: #{tpu_custom_call.1} parent=0
    #allocation2 [shape = 'u8[458752]{0}', space=vmem, size = 0x70000, scoped, tag = 'input window, operand 2, single buffered']
    #allocation3 [shape = 's32[1]{0}', space=sflag, size = 0x4, scoped, tag = 'scoped memory for tpu_custom_call.1']
    #allocation4 [shape = 's32[1]{0}', space=sflag, size = 0x4, scoped, tag = 'scoped memory for tpu_custom_call.1']
    #allocation5 [shape = 'u8[32768]{0}', space=vmem, size = 0x8000, scoped, tag = 'output window, operand 0, single buffered']
    %9 = vsyncpa [#allocation3], 0
    %10 = vsyncpa [#allocation4], 0
    // Predicated region
    $region2: #{tpu_custom_call.1} parent=1 // pred_check
      _
    $region3: #{tpu_custom_call.1} parent=1 // pred_check_branch
      %12 = sbr.rel (0) target = $region5
    $region4: #{tpu_custom_call.1} parent=1 // pred_region
      _
    $region5: #{tpu_custom_call.1} parent=1 // pred_fallthru
      _
    // Predicated region
    $region6: #{tpu_custom_call.1} parent=1 // pred_check
      _
    $region7: #{tpu_custom_call.1} parent=1 // pred_check_branch
      %14 = sbr.rel (0) target = $region9
    $region8: #{tpu_custom_call.1} parent=1 // pred_region
      _
    $region9: #{tpu_custom_call.1} parent=1 // pred_fallthru
      _
    // Predicated region
    $region10: #{tpu_custom_call.1} parent=1 // pred_check
      _
    $region11: #{tpu_custom_call.1} parent=1 // pred_check_branch
      %16 = sbr.rel (0) target = $region13
    $region12: #{tpu_custom_call.1} parent=1 // pred_region
      %18 = vsyncadd [#allocation3], 0
      %s19 = sshll.u32 %s2, 4
      %s20 = int_to_ptr.hbm [resolvable:$true] %s19
      %s21 = sshll.u32 [#allocation2], 4
      %s22 = int_to_ptr.vmem [resolvable:$true] %s21
      %27 = dma.hbm_to_vmem [thread:$0]  %s20, 14336, %s22, [#allocation3], 128, 128, 8
    $region13: #{tpu_custom_call.1} parent=1 // pred_fallthru
      _
    // Predicated region
    $region14: #{tpu_custom_call.1} parent=1 // pred_check
      _
    $region15: #{tpu_custom_call.1} parent=1 // pred_check_branch
      %29 = sbr.rel (0) target = $region17
    $region16: #{tpu_custom_call.1} parent=1 // pred_region
      _
    $region17: #{tpu_custom_call.1} parent=1 // pred_fallthru
      _
    // Predicated region
    $region18: #{tpu_custom_call.1} parent=1 // pred_check
      _
    $region19: #{tpu_custom_call.1} parent=1 // pred_check_branch
      %31 = sbr.rel (0) target = $region21
    $region20: #{tpu_custom_call.1} parent=1 // pred_region
      %33 = dma.done [#allocation3], 14336
    $region21: #{tpu_custom_call.1} parent=1 // pred_fallthru
      _
    %v34 = vld [vmem:[%s0] sm:$0xff]
    %v35 = vld [vmem:[%s0 + $0x8] sm:$0xff]
    %v36 = vld [vmem:[%s0 + $0x10] sm:$0xff]
    %v37 = vld [vmem:[%s0 + $0x18] sm:$0xff]
    %v38 = vld [vmem:[%s0 + $0x20] sm:$0xff]
    %v39 = vld [vmem:[%s0 + $0x28] sm:$0xff]
    %v40 = vld [vmem:[%s0 + $0x30] sm:$0xff]
    %v41 = vld [vmem:[%s0 + $0x38] sm:$0xff]
    %v42 = vld [vmem:[%s3] sm:$0xff]
    %v43 = vld [vmem:[%s1] sm:$0xff]
    %v44 = vld [vmem:[%s1 + $0x8] sm:$0xff]
    %vm45 = vcmask 64512
    %v47 = vsel %vm45, %v34, 0
    %v50 = vsel %vm45, %v35, 0
    %v53 = vsel %vm45, %v36, 0
    %v56 = vsel %vm45, %v37, 0
    %v59 = vsel %vm45, %v38, 0
    %v62 = vsel %vm45, %v39, 0
    %v65 = vsel %vm45, %v40, 0
    %v68 = vsel %vm45, %v41, 0
    %70 = vmatpush.msra.mxu0 0.0
    %71 = vmatpush.msra.mxu0 0.0
    %72 = vmatpush.msra.mxu0 0.0
    %73 = vmatpush.msra.mxu0 0.0
    %74 = vmatpush.msra.mxu0 0.0
    %75 = vmatpush.msra.mxu0 0.0
    %76 = vmatpush.msra.mxu0 0.0
    %77 = vmatpush.msra.mxu0 0.0
    %78 = vmatpush.msra.mxu0 0.0
    %79 = vmatpush.msra.mxu0 0.0
    %80 = vmatpush.msra.mxu0 0.0
    %81 = vmatpush.msra.mxu0 0.0
    %82 = vmatpush.msra.mxu0 0.0
    %83 = vmatpush.msra.mxu0 0.0
    %84 = vmatpush.msra.mxu0 0.0
    %85 = vmatpush.msra.mxu0 %v43
    %86 = vmatmul.f32.gmra.mxu0 %v47
    %v87 = vpop.f32.mrf.mxu0
    %v88 = vadd.f32 0.0, %v87
    %89 = vmatmul.f32.gmra.mxu0 %v50
    %v90 = vpop.f32.mrf.mxu0
    %v91 = vadd.f32 0.0, %v90
    %92 = vmatmul.f32.gmra.mxu0 %v53
    %v93 = vpop.f32.mrf.mxu0
    %v94 = vadd.f32 0.0, %v93
    %95 = vmatmul.f32.gmra.mxu0 %v56
    %v96 = vpop.f32.mrf.mxu0
    %v97 = vadd.f32 0.0, %v96
    %98 = vmatmul.f32.gmra.mxu0 %v59
    %v99 = vpop.f32.mrf.mxu0
    %v100 = vadd.f32 0.0, %v99
    %101 = vmatmul.f32.gmra.mxu0 %v62
    %v102 = vpop.f32.mrf.mxu0
    %v103 = vadd.f32 0.0, %v102
    %104 = vmatmul.f32.gmra.mxu0 %v65
    %v105 = vpop.f32.mrf.mxu0
    %v106 = vadd.f32 0.0, %v105
    %107 = vmatmul.f32.gmra.mxu0 %v68
    %v108 = vpop.f32.mrf.mxu0
    %v109 = vadd.f32 0.0, %v108
    %110 = vdwg.mxu0
    %111 = vmatpush.msra.mxu0 0.0
    %112 = vmatpush.msra.mxu0 0.0
    %113 = vmatpush.msra.mxu0 0.0
    %114 = vmatpush.msra.mxu0 0.0
    %115 = vmatpush.msra.mxu0 0.0
    %116 = vmatpush.msra.mxu0 0.0
    %117 = vmatpush.msra.mxu0 0.0
    %118 = vmatpush.msra.mxu0 0.0
    %119 = vmatpush.msra.mxu0 0.0
    %120 = vmatpush.msra.mxu0 0.0
    %121 = vmatpush.msra.mxu0 0.0
    %122 = vmatpush.msra.mxu0 0.0
    %123 = vmatpush.msra.mxu0 0.0
    %124 = vmatpush.msra.mxu0 0.0
    %125 = vmatpush.msra.mxu0 0.0
    %126 = vmatpush.msra.mxu0 %v44
    %127 = vmatmul.f32.gmra.mxu0 %v47
    %v128 = vpop.f32.mrf.mxu0
    %v129 = vadd.f32 0.0, %v128
    %130 = vmatmul.f32.gmra.mxu0 %v50
    %v131 = vpop.f32.mrf.mxu0
    %v132 = vadd.f32 0.0, %v131
    %133 = vmatmul.f32.gmra.mxu0 %v53
    %v134 = vpop.f32.mrf.mxu0
    %v135 = vadd.f32 0.0, %v134
    %136 = vmatmul.f32.gmra.mxu0 %v56
    %v137 = vpop.f32.mrf.mxu0
    %v138 = vadd.f32 0.0, %v137
    %139 = vmatmul.f32.gmra.mxu0 %v59
    %v140 = vpop.f32.mrf.mxu0
    %v141 = vadd.f32 0.0, %v140
    %142 = vmatmul.f32.gmra.mxu0 %v62
    %v143 = vpop.f32.mrf.mxu0
    %v144 = vadd.f32 0.0, %v143
    %145 = vmatmul.f32.gmra.mxu0 %v65
    %v146 = vpop.f32.mrf.mxu0
    %v147 = vadd.f32 0.0, %v146
    %148 = vmatmul.f32.gmra.mxu0 %v68
    %v149 = vpop.f32.mrf.mxu0
    %v150 = vadd.f32 0.0, %v149
    %151 = vdwg.mxu0
    %v152 = vperm.slane %v42, 0
    %v153 = vadd.f32 %v88, %v152
    %v154 = vadd.f32 %v91, %v152
    %v155 = vadd.f32 %v94, %v152
    %v156 = vadd.f32 %v97, %v152
    %v157 = vadd.f32 %v100, %v152
    %v158 = vadd.f32 %v103, %v152
    %v159 = vadd.f32 %v106, %v152
    %v160 = vadd.f32 %v109, %v152
    %v161 = vmax.f32 %v153, 0.0
    %v162 = vmax.f32 %v154, 0.0
    %v163 = vmax.f32 %v155, 0.0
    %v164 = vmax.f32 %v156, 0.0
    %v165 = vmax.f32 %v157, 0.0
    %v166 = vmax.f32 %v158, 0.0
    %v167 = vmax.f32 %v159, 0.0
    %v168 = vmax.f32 %v160, 0.0
    %v169 = vld [vmem:[#allocation2] sm:$0xff]
    %v170 = vld [vmem:[#allocation2 + $0x8] sm:$0xff]
    %v171 = vld [vmem:[#allocation2 + $0x10] sm:$0xff]
    %v172 = vld [vmem:[#allocation2 + $0x18] sm:$0xff]
    %v173 = vld [vmem:[#allocation2 + $0x20] sm:$0xff]
    %v174 = vld [vmem:[#allocation2 + $0x28] sm:$0xff]
    %v175 = vld [vmem:[#allocation2 + $0x30] sm:$0xff]
    %v176 = vld [vmem:[#allocation2 + $0x38] sm:$0xff]
    %v177 = vld [vmem:[#allocation2 + $0x40] sm:$0xff]
    %v178 = vld [vmem:[#allocation2 + $0x48] sm:$0xff]
    %v179 = vld [vmem:[#allocation2 + $0x50] sm:$0xff]
    %v180 = vld [vmem:[#allocation2 + $0x58] sm:$0xff]
    %v181 = vld [vmem:[#allocation2 + $0x60] sm:$0xff]
    %v182 = vld [vmem:[#allocation2 + $0x68] sm:$0xff]
    %v183 = vld [vmem:[#allocation2 + $0x70] sm:$0xff]
    %v184 = vld [vmem:[#allocation2 + $0x78] sm:$0xff]
    %v185 = vperm.slane %v42, 1
    %186 = vmatpush.msra.mxu0 %v184
    %187 = vmatpush.msra.mxu0 %v183
    %188 = vmatpush.msra.mxu0 %v182
    %189 = vmatpush.msra.mxu0 %v181
    %190 = vmatpush.msra.mxu0 %v180
    %191 = vmatpush.msra.mxu0 %v179
    %192 = vmatpush.msra.mxu0 %v178
    %193 = vmatpush.msra.mxu0 %v177
    %194 = vmatpush.msra.mxu0 %v176
    %195 = vmatpush.msra.mxu0 %v175
    %196 = vmatpush.msra.mxu0 %v174
    %197 = vmatpush.msra.mxu0 %v173
    %198 = vmatpush.msra.mxu0 %v172
    %199 = vmatpush.msra.mxu0 %v171
    %200 = vmatpush.msra.mxu0 %v170
    %201 = vmatpush.msra.mxu0 %v169
    %202 = vmatmul.f32.gmra.mxu0 %v161
    %v203 = vpop.f32.mrf.mxu0
    %v204 = vadd.f32 %v185, %v203
    %205 = vmatmul.f32.gmra.mxu0 %v162
    %v206 = vpop.f32.mrf.mxu0
    %v207 = vadd.f32 %v185, %v206
    %208 = vmatmul.f32.gmra.mxu0 %v163
    %v209 = vpop.f32.mrf.mxu0
    %v210 = vadd.f32 %v185, %v209
    %211 = vmatmul.f32.gmra.mxu0 %v164
    %v212 = vpop.f32.mrf.mxu0
    %v213 = vadd.f32 %v185, %v212
    %214 = vmatmul.f32.gmra.mxu0 %v165
    %v215 = vpop.f32.mrf.mxu0
    %v216 = vadd.f32 %v185, %v215
    %217 = vmatmul.f32.gmra.mxu0 %v166
    %v218 = vpop.f32.mrf.mxu0
    %v219 = vadd.f32 %v185, %v218
    %220 = vmatmul.f32.gmra.mxu0 %v167
    %v221 = vpop.f32.mrf.mxu0
    %v222 = vadd.f32 %v185, %v221
    %223 = vmatmul.f32.gmra.mxu0 %v168
    %v224 = vpop.f32.mrf.mxu0
    %v225 = vadd.f32 %v185, %v224
    %226 = vdwg.mxu0
    %v227 = vmax.f32 %v204, 0.0
    %v228 = vmax.f32 %v207, 0.0
    %v229 = vmax.f32 %v210, 0.0
    %v230 = vmax.f32 %v213, 0.0
    %v231 = vmax.f32 %v216, 0.0
    %v232 = vmax.f32 %v219, 0.0
    %v233 = vmax.f32 %v222, 0.0
    %v234 = vmax.f32 %v225, 0.0
    %v235 = vld [vmem:[#allocation2 + $0x80] sm:$0xff]
    %v236 = vld [vmem:[#allocation2 + $0x88] sm:$0xff]
    %v237 = vld [vmem:[#allocation2 + $0x90] sm:$0xff]
    %v238 = vld [vmem:[#allocation2 + $0x98] sm:$0xff]
    %v239 = vld [vmem:[#allocation2 + $0xa0] sm:$0xff]
    %v240 = vld [vmem:[#allocation2 + $0xa8] sm:$0xff]
    %v241 = vld [vmem:[#allocation2 + $0xb0] sm:$0xff]
    %v242 = vld [vmem:[#allocation2 + $0xb8] sm:$0xff]
    %v243 = vld [vmem:[#allocation2 + $0xc0] sm:$0xff]
    %v244 = vld [vmem:[#allocation2 + $0xc8] sm:$0xff]
    %v245 = vld [vmem:[#allocation2 + $0xd0] sm:$0xff]
    %v246 = vld [vmem:[#allocation2 + $0xd8] sm:$0xff]
    %v247 = vld [vmem:[#allocation2 + $0xe0] sm:$0xff]
    %v248 = vld [vmem:[#allocation2 + $0xe8] sm:$0xff]
    %v249 = vld [vmem:[#allocation2 + $0xf0] sm:$0xff]
    %v250 = vld [vmem:[#allocation2 + $0xf8] sm:$0xff]
    %v251 = vperm.slane %v42, 2
    %252 = vmatpush.msra.mxu0 %v250
    %253 = vmatpush.msra.mxu0 %v249
    %254 = vmatpush.msra.mxu0 %v248
    %255 = vmatpush.msra.mxu0 %v247
    %256 = vmatpush.msra.mxu0 %v246
    %257 = vmatpush.msra.mxu0 %v245
    %258 = vmatpush.msra.mxu0 %v244
    %259 = vmatpush.msra.mxu0 %v243
    %260 = vmatpush.msra.mxu0 %v242
    %261 = vmatpush.msra.mxu0 %v241
    %262 = vmatpush.msra.mxu0 %v240
    %263 = vmatpush.msra.mxu0 %v239
    %264 = vmatpush.msra.mxu0 %v238
    %265 = vmatpush.msra.mxu0 %v237
    %266 = vmatpush.msra.mxu0 %v236
    %267 = vmatpush.msra.mxu0 %v235
    %268 = vmatmul.f32.gmra.mxu0 %v227
    %v269 = vpop.f32.mrf.mxu0
    %v270 = vadd.f32 %v251, %v269
    %271 = vmatmul.f32.gmra.mxu0 %v228
    %v272 = vpop.f32.mrf.mxu0
    %v273 = vadd.f32 %v251, %v272
    %274 = vmatmul.f32.gmra.mxu0 %v229
    %v275 = vpop.f32.mrf.mxu0
    %v276 = vadd.f32 %v251, %v275
    %277 = vmatmul.f32.gmra.mxu0 %v230
    %v278 = vpop.f32.mrf.mxu0
    %v279 = vadd.f32 %v251, %v278
    %280 = vmatmul.f32.gmra.mxu0 %v231
    %v281 = vpop.f32.mrf.mxu0
    %v282 = vadd.f32 %v251, %v281
    %283 = vmatmul.f32.gmra.mxu0 %v232
    %v284 = vpop.f32.mrf.mxu0
    %v285 = vadd.f32 %v251, %v284
    %286 = vmatmul.f32.gmra.mxu0 %v233
    %v287 = vpop.f32.mrf.mxu0
    %v288 = vadd.f32 %v251, %v287
    %289 = vmatmul.f32.gmra.mxu0 %v234
    %v290 = vpop.f32.mrf.mxu0
    %v291 = vadd.f32 %v251, %v290
    %292 = vdwg.mxu0
    %v293 = vmax.f32 %v270, 0.0
    %v294 = vmax.f32 %v273, 0.0
    %v295 = vmax.f32 %v276, 0.0
    %v296 = vmax.f32 %v279, 0.0
    %v297 = vmax.f32 %v282, 0.0
    %v298 = vmax.f32 %v285, 0.0
    %v299 = vmax.f32 %v288, 0.0
    %v300 = vmax.f32 %v291, 0.0
    %v301 = vld [vmem:[#allocation2 + $0x100] sm:$0xff]
    %v302 = vld [vmem:[#allocation2 + $0x108] sm:$0xff]
    %v303 = vld [vmem:[#allocation2 + $0x110] sm:$0xff]
    %v304 = vld [vmem:[#allocation2 + $0x118] sm:$0xff]
    %v305 = vld [vmem:[#allocation2 + $0x120] sm:$0xff]
    %v306 = vld [vmem:[#allocation2 + $0x128] sm:$0xff]
    %v307 = vld [vmem:[#allocation2 + $0x130] sm:$0xff]
    %v308 = vld [vmem:[#allocation2 + $0x138] sm:$0xff]
    %v309 = vld [vmem:[#allocation2 + $0x140] sm:$0xff]
    %v310 = vld [vmem:[#allocation2 + $0x148] sm:$0xff]
    %v311 = vld [vmem:[#allocation2 + $0x150] sm:$0xff]
    %v312 = vld [vmem:[#allocation2 + $0x158] sm:$0xff]
    %v313 = vld [vmem:[#allocation2 + $0x160] sm:$0xff]
    %v314 = vld [vmem:[#allocation2 + $0x168] sm:$0xff]
    %v315 = vld [vmem:[#allocation2 + $0x170] sm:$0xff]
    %v316 = vld [vmem:[#allocation2 + $0x178] sm:$0xff]
    %v317 = vperm.slane %v42, 3
    %318 = vmatpush.msra.mxu0 %v316
    %319 = vmatpush.msra.mxu0 %v315
    %320 = vmatpush.msra.mxu0 %v314
    %321 = vmatpush.msra.mxu0 %v313
    %322 = vmatpush.msra.mxu0 %v312
    %323 = vmatpush.msra.mxu0 %v311
    %324 = vmatpush.msra.mxu0 %v310
    %325 = vmatpush.msra.mxu0 %v309
    %326 = vmatpush.msra.mxu0 %v308
    %327 = vmatpush.msra.mxu0 %v307
    %328 = vmatpush.msra.mxu0 %v306
    %329 = vmatpush.msra.mxu0 %v305
    %330 = vmatpush.msra.mxu0 %v304
    %331 = vmatpush.msra.mxu0 %v303
    %332 = vmatpush.msra.mxu0 %v302
    %333 = vmatpush.msra.mxu0 %v301
    %334 = vmatmul.f32.gmra.mxu0 %v293
    %v335 = vpop.f32.mrf.mxu0
    %v336 = vadd.f32 %v317, %v335
    %337 = vmatmul.f32.gmra.mxu0 %v294
    %v338 = vpop.f32.mrf.mxu0
    %v339 = vadd.f32 %v317, %v338
    %340 = vmatmul.f32.gmra.mxu0 %v295
    %v341 = vpop.f32.mrf.mxu0
    %v342 = vadd.f32 %v317, %v341
    %343 = vmatmul.f32.gmra.mxu0 %v296
    %v344 = vpop.f32.mrf.mxu0
    %v345 = vadd.f32 %v317, %v344
    %346 = vmatmul.f32.gmra.mxu0 %v297
    %v347 = vpop.f32.mrf.mxu0
    %v348 = vadd.f32 %v317, %v347
    %349 = vmatmul.f32.gmra.mxu0 %v298
    %v350 = vpop.f32.mrf.mxu0
    %v351 = vadd.f32 %v317, %v350
    %352 = vmatmul.f32.gmra.mxu0 %v299
    %v353 = vpop.f32.mrf.mxu0
    %v354 = vadd.f32 %v317, %v353
    %355 = vmatmul.f32.gmra.mxu0 %v300
    %v356 = vpop.f32.mrf.mxu0
    %v357 = vadd.f32 %v317, %v356
    %358 = vdwg.mxu0
    %v359 = vmax.f32 %v336, 0.0
    %v360 = vmax.f32 %v339, 0.0
    %v361 = vmax.f32 %v342, 0.0
    %v362 = vmax.f32 %v345, 0.0
    %v363 = vmax.f32 %v348, 0.0
    %v364 = vmax.f32 %v351, 0.0
    %v365 = vmax.f32 %v354, 0.0
    %v366 = vmax.f32 %v357, 0.0
    %v367 = vld [vmem:[#allocation2 + $0x180] sm:$0xff]
    %v368 = vld [vmem:[#allocation2 + $0x188] sm:$0xff]
    %v369 = vld [vmem:[#allocation2 + $0x190] sm:$0xff]
    %v370 = vld [vmem:[#allocation2 + $0x198] sm:$0xff]
    %v371 = vld [vmem:[#allocation2 + $0x1a0] sm:$0xff]
    %v372 = vld [vmem:[#allocation2 + $0x1a8] sm:$0xff]
    %v373 = vld [vmem:[#allocation2 + $0x1b0] sm:$0xff]
    %v374 = vld [vmem:[#allocation2 + $0x1b8] sm:$0xff]
    %v375 = vld [vmem:[#allocation2 + $0x1c0] sm:$0xff]
    %v376 = vld [vmem:[#allocation2 + $0x1c8] sm:$0xff]
    %v377 = vld [vmem:[#allocation2 + $0x1d0] sm:$0xff]
    %v378 = vld [vmem:[#allocation2 + $0x1d8] sm:$0xff]
    %v379 = vld [vmem:[#allocation2 + $0x1e0] sm:$0xff]
    %v380 = vld [vmem:[#allocation2 + $0x1e8] sm:$0xff]
    %v381 = vld [vmem:[#allocation2 + $0x1f0] sm:$0xff]
    %v382 = vld [vmem:[#allocation2 + $0x1f8] sm:$0xff]
    %383 = vmatpush.msra.mxu0 %v382
    %384 = vmatpush.msra.mxu0 %v381
    %385 = vmatpush.msra.mxu0 %v380
    %386 = vmatpush.msra.mxu0 %v379
    %387 = vmatpush.msra.mxu0 %v378
    %388 = vmatpush.msra.mxu0 %v377
    %389 = vmatpush.msra.mxu0 %v376
    %390 = vmatpush.msra.mxu0 %v375
    %391 = vmatpush.msra.mxu0 %v374
    %392 = vmatpush.msra.mxu0 %v373
    %393 = vmatpush.msra.mxu0 %v372
    %394 = vmatpush.msra.mxu0 %v371
    %395 = vmatpush.msra.mxu0 %v370
    %396 = vmatpush.msra.mxu0 %v369
    %397 = vmatpush.msra.mxu0 %v368
    %398 = vmatpush.msra.mxu0 %v367
    %399 = vmatmul.f32.gmra.mxu0 %v359
    %v400 = vpop.f32.mrf.mxu0
    %v401 = vadd.f32 %v129, %v400
    %402 = vmatmul.f32.gmra.mxu0 %v360
    %v403 = vpop.f32.mrf.mxu0
    %v404 = vadd.f32 %v132, %v403
    %405 = vmatmul.f32.gmra.mxu0 %v361
    %v406 = vpop.f32.mrf.mxu0
    %v407 = vadd.f32 %v135, %v406
    %408 = vmatmul.f32.gmra.mxu0 %v362
    %v409 = vpop.f32.mrf.mxu0
    %v410 = vadd.f32 %v138, %v409
    %411 = vmatmul.f32.gmra.mxu0 %v363
    %v412 = vpop.f32.mrf.mxu0
    %v413 = vadd.f32 %v141, %v412
    %414 = vmatmul.f32.gmra.mxu0 %v364
    %v415 = vpop.f32.mrf.mxu0
    %v416 = vadd.f32 %v144, %v415
    %417 = vmatmul.f32.gmra.mxu0 %v365
    %v418 = vpop.f32.mrf.mxu0
    %v419 = vadd.f32 %v147, %v418
    %420 = vmatmul.f32.gmra.mxu0 %v366
    %v421 = vpop.f32.mrf.mxu0
    %v422 = vadd.f32 %v150, %v421
    %423 = vdwg.mxu0
    %v424 = vperm.slane %v42, 4
    %v425 = vadd.f32 %v401, %v424
    %v426 = vadd.f32 %v404, %v424
    %v427 = vadd.f32 %v407, %v424
    %v428 = vadd.f32 %v410, %v424
    %v429 = vadd.f32 %v413, %v424
    %v430 = vadd.f32 %v416, %v424
    %v431 = vadd.f32 %v419, %v424
    %v432 = vadd.f32 %v422, %v424
    %v433 = vmax.f32 %v425, 0.0
    %v434 = vmax.f32 %v426, 0.0
    %v435 = vmax.f32 %v427, 0.0
    %v436 = vmax.f32 %v428, 0.0
    %v437 = vmax.f32 %v429, 0.0
    %v438 = vmax.f32 %v430, 0.0
    %v439 = vmax.f32 %v431, 0.0
    %v440 = vmax.f32 %v432, 0.0
    %v441 = vld [vmem:[#allocation2 + $0x200] sm:$0xff]
    %v442 = vld [vmem:[#allocation2 + $0x208] sm:$0xff]
    %v443 = vld [vmem:[#allocation2 + $0x210] sm:$0xff]
    %v444 = vld [vmem:[#allocation2 + $0x218] sm:$0xff]
    %v445 = vld [vmem:[#allocation2 + $0x220] sm:$0xff]
    %v446 = vld [vmem:[#allocation2 + $0x228] sm:$0xff]
    %v447 = vld [vmem:[#allocation2 + $0x230] sm:$0xff]
    %v448 = vld [vmem:[#allocation2 + $0x238] sm:$0xff]
    %v449 = vld [vmem:[#allocation2 + $0x240] sm:$0xff]
    %v450 = vld [vmem:[#allocation2 + $0x248] sm:$0xff]
    %v451 = vld [vmem:[#allocation2 + $0x250] sm:$0xff]
    %v452 = vld [vmem:[#allocation2 + $0x258] sm:$0xff]
    %v453 = vld [vmem:[#allocation2 + $0x260] sm:$0xff]
    %v454 = vld [vmem:[#allocation2 + $0x268] sm:$0xff]
    %v455 = vld [vmem:[#allocation2 + $0x270] sm:$0xff]
    %v456 = vld [vmem:[#allocation2 + $0x278] sm:$0xff]
    %v457 = vperm.slane %v42, 5
    %458 = vmatpush.msra.mxu0 %v456
    %459 = vmatpush.msra.mxu0 %v455
    %460 = vmatpush.msra.mxu0 %v454
    %461 = vmatpush.msra.mxu0 %v453
    %462 = vmatpush.msra.mxu0 %v452
    %463 = vmatpush.msra.mxu0 %v451
    %464 = vmatpush.msra.mxu0 %v450
    %465 = vmatpush.msra.mxu0 %v449
    %466 = vmatpush.msra.mxu0 %v448
    %467 = vmatpush.msra.mxu0 %v447
    %468 = vmatpush.msra.mxu0 %v446
    %469 = vmatpush.msra.mxu0 %v445
    %470 = vmatpush.msra.mxu0 %v444
    %471 = vmatpush.msra.mxu0 %v443
    %472 = vmatpush.msra.mxu0 %v442
    %473 = vmatpush.msra.mxu0 %v441
    %474 = vmatmul.f32.gmra.mxu0 %v433
    %v475 = vpop.f32.mrf.mxu0
    %v476 = vadd.f32 %v457, %v475
    %477 = vmatmul.f32.gmra.mxu0 %v434
    %v478 = vpop.f32.mrf.mxu0
    %v479 = vadd.f32 %v457, %v478
    %480 = vmatmul.f32.gmra.mxu0 %v435
    %v481 = vpop.f32.mrf.mxu0
    %v482 = vadd.f32 %v457, %v481
    %483 = vmatmul.f32.gmra.mxu0 %v436
    %v484 = vpop.f32.mrf.mxu0
    %v485 = vadd.f32 %v457, %v484
    %486 = vmatmul.f32.gmra.mxu0 %v437
    %v487 = vpop.f32.mrf.mxu0
    %v488 = vadd.f32 %v457, %v487
    %489 = vmatmul.f32.gmra.mxu0 %v438
    %v490 = vpop.f32.mrf.mxu0
    %v491 = vadd.f32 %v457, %v490
    %492 = vmatmul.f32.gmra.mxu0 %v439
    %v493 = vpop.f32.mrf.mxu0
    %v494 = vadd.f32 %v457, %v493
    %495 = vmatmul.f32.gmra.mxu0 %v440
    %v496 = vpop.f32.mrf.mxu0
    %v497 = vadd.f32 %v457, %v496
    %498 = vdwg.mxu0
    %v499 = vmax.f32 %v476, 0.0
    %v500 = vmax.f32 %v479, 0.0
    %v501 = vmax.f32 %v482, 0.0
    %v502 = vmax.f32 %v485, 0.0
    %v503 = vmax.f32 %v488, 0.0
    %v504 = vmax.f32 %v491, 0.0
    %v505 = vmax.f32 %v494, 0.0
    %v506 = vmax.f32 %v497, 0.0
    %v507 = vld [vmem:[#allocation2 + $0x280] sm:$0xff]
    %v508 = vld [vmem:[#allocation2 + $0x288] sm:$0xff]
    %v509 = vld [vmem:[#allocation2 + $0x290] sm:$0xff]
    %v510 = vld [vmem:[#allocation2 + $0x298] sm:$0xff]
    %v511 = vld [vmem:[#allocation2 + $0x2a0] sm:$0xff]
    %v512 = vld [vmem:[#allocation2 + $0x2a8] sm:$0xff]
    %v513 = vld [vmem:[#allocation2 + $0x2b0] sm:$0xff]
    %v514 = vld [vmem:[#allocation2 + $0x2b8] sm:$0xff]
    %v515 = vld [vmem:[#allocation2 + $0x2c0] sm:$0xff]
    %v516 = vld [vmem:[#allocation2 + $0x2c8] sm:$0xff]
    %v517 = vld [vmem:[#allocation2 + $0x2d0] sm:$0xff]
    %v518 = vld [vmem:[#allocation2 + $0x2d8] sm:$0xff]
    %v519 = vld [vmem:[#allocation2 + $0x2e0] sm:$0xff]
    %v520 = vld [vmem:[#allocation2 + $0x2e8] sm:$0xff]
    %v521 = vld [vmem:[#allocation2 + $0x2f0] sm:$0xff]
    %v522 = vld [vmem:[#allocation2 + $0x2f8] sm:$0xff]
    %v523 = vperm.slane %v42, 6
    %524 = vmatpush.msra.mxu0 %v522
    %525 = vmatpush.msra.mxu0 %v521
    %526 = vmatpush.msra.mxu0 %v520
    %527 = vmatpush.msra.mxu0 %v519
    %528 = vmatpush.msra.mxu0 %v518
    %529 = vmatpush.msra.mxu0 %v517
    %530 = vmatpush.msra.mxu0 %v516
    %531 = vmatpush.msra.mxu0 %v515
    %532 = vmatpush.msra.mxu0 %v514
    %533 = vmatpush.msra.mxu0 %v513
    %534 = vmatpush.msra.mxu0 %v512
    %535 = vmatpush.msra.mxu0 %v511
    %536 = vmatpush.msra.mxu0 %v510
    %537 = vmatpush.msra.mxu0 %v509
    %538 = vmatpush.msra.mxu0 %v508
    %539 = vmatpush.msra.mxu0 %v507
    %540 = vmatmul.f32.gmra.mxu0 %v499
    %v541 = vpop.f32.mrf.mxu0
    %v542 = vadd.f32 %v523, %v541
    %543 = vmatmul.f32.gmra.mxu0 %v500
    %v544 = vpop.f32.mrf.mxu0
    %v545 = vadd.f32 %v523, %v544
    %546 = vmatmul.f32.gmra.mxu0 %v501
    %v547 = vpop.f32.mrf.mxu0
    %v548 = vadd.f32 %v523, %v547
    %549 = vmatmul.f32.gmra.mxu0 %v502
    %v550 = vpop.f32.mrf.mxu0
    %v551 = vadd.f32 %v523, %v550
    %552 = vmatmul.f32.gmra.mxu0 %v503
    %v553 = vpop.f32.mrf.mxu0
    %v554 = vadd.f32 %v523, %v553
    %555 = vmatmul.f32.gmra.mxu0 %v504
    %v556 = vpop.f32.mrf.mxu0
    %v557 = vadd.f32 %v523, %v556
    %558 = vmatmul.f32.gmra.mxu0 %v505
    %v559 = vpop.f32.mrf.mxu0
    %v560 = vadd.f32 %v523, %v559
    %561 = vmatmul.f32.gmra.mxu0 %v506
    %v562 = vpop.f32.mrf.mxu0
    %v563 = vadd.f32 %v523, %v562
    %564 = vdwg.mxu0
    %v565 = vmax.f32 %v542, 0.0
    %v566 = vmax.f32 %v545, 0.0
    %v567 = vmax.f32 %v548, 0.0
    %v568 = vmax.f32 %v551, 0.0
    %v569 = vmax.f32 %v554, 0.0
    %v570 = vmax.f32 %v557, 0.0
    %v571 = vmax.f32 %v560, 0.0
    %v572 = vmax.f32 %v563, 0.0
    %v573 = vld [vmem:[#allocation2 + $0x300] sm:$0xff]
    %v574 = vld [vmem:[#allocation2 + $0x308] sm:$0xff]
    %v575 = vld [vmem:[#allocation2 + $0x310] sm:$0xff]
    %v576 = vld [vmem:[#allocation2 + $0x318] sm:$0xff]
    %v577 = vld [vmem:[#allocation2 + $0x320] sm:$0xff]
    %v578 = vld [vmem:[#allocation2 + $0x328] sm:$0xff]
    %v579 = vld [vmem:[#allocation2 + $0x330] sm:$0xff]
    %v580 = vld [vmem:[#allocation2 + $0x338] sm:$0xff]
    %v581 = vld [vmem:[#allocation2 + $0x340] sm:$0xff]
    %v582 = vld [vmem:[#allocation2 + $0x348] sm:$0xff]
    %v583 = vld [vmem:[#allocation2 + $0x350] sm:$0xff]
    %v584 = vld [vmem:[#allocation2 + $0x358] sm:$0xff]
    %v585 = vld [vmem:[#allocation2 + $0x360] sm:$0xff]
    %v586 = vld [vmem:[#allocation2 + $0x368] sm:$0xff]
    %v587 = vld [vmem:[#allocation2 + $0x370] sm:$0xff]
    %v588 = vld [vmem:[#allocation2 + $0x378] sm:$0xff]
    %v589 = vperm.slane %v42, 7
    %590 = vmatpush.msra.mxu0 %v588
    %591 = vmatpush.msra.mxu0 %v587
    %592 = vmatpush.msra.mxu0 %v586
    %593 = vmatpush.msra.mxu0 %v585
    %594 = vmatpush.msra.mxu0 %v584
    %595 = vmatpush.msra.mxu0 %v583
    %596 = vmatpush.msra.mxu0 %v582
    %597 = vmatpush.msra.mxu0 %v581
    %598 = vmatpush.msra.mxu0 %v580
    %599 = vmatpush.msra.mxu0 %v579
    %600 = vmatpush.msra.mxu0 %v578
    %601 = vmatpush.msra.mxu0 %v577
    %602 = vmatpush.msra.mxu0 %v576
    %603 = vmatpush.msra.mxu0 %v575
    %604 = vmatpush.msra.mxu0 %v574
    %605 = vmatpush.msra.mxu0 %v573
    %606 = vmatmul.f32.gmra.mxu0 %v565
    %v607 = vpop.f32.mrf.mxu0
    %v608 = vadd.f32 %v589, %v607
    %609 = vmatmul.f32.gmra.mxu0 %v566
    %v610 = vpop.f32.mrf.mxu0
    %v611 = vadd.f32 %v589, %v610
    %612 = vmatmul.f32.gmra.mxu0 %v567
    %v613 = vpop.f32.mrf.mxu0
    %v614 = vadd.f32 %v589, %v613
    %615 = vmatmul.f32.gmra.mxu0 %v568
    %v616 = vpop.f32.mrf.mxu0
    %v617 = vadd.f32 %v589, %v616
    %618 = vmatmul.f32.gmra.mxu0 %v569
    %v619 = vpop.f32.mrf.mxu0
    %v620 = vadd.f32 %v589, %v619
    %621 = vmatmul.f32.gmra.mxu0 %v570
    %v622 = vpop.f32.mrf.mxu0
    %v623 = vadd.f32 %v589, %v622
    %624 = vmatmul.f32.gmra.mxu0 %v571
    %v625 = vpop.f32.mrf.mxu0
    %v626 = vadd.f32 %v589, %v625
    %627 = vmatmul.f32.gmra.mxu0 %v572
    %v628 = vpop.f32.mrf.mxu0
    %v629 = vadd.f32 %v589, %v628
    %630 = vdwg.mxu0
    %v631 = vtanh.pop %v608
    %v632 = vtanh.pop %v611
    %v633 = vtanh.pop %v614
    %v634 = vtanh.pop %v617
    %v635 = vtanh.pop %v620
    %v636 = vtanh.pop %v623
    %v637 = vtanh.pop %v626
    %v638 = vtanh.pop %v629
    %639 = vst [vmem:[#allocation5] sm:$0xff] %v631
    %640 = vst [vmem:[#allocation5 + $0x8] sm:$0xff] %v632
    %641 = vst [vmem:[#allocation5 + $0x10] sm:$0xff] %v633
    %642 = vst [vmem:[#allocation5 + $0x18] sm:$0xff] %v634
    %643 = vst [vmem:[#allocation5 + $0x20] sm:$0xff] %v635
    %644 = vst [vmem:[#allocation5 + $0x28] sm:$0xff] %v636
    %645 = vst [vmem:[#allocation5 + $0x30] sm:$0xff] %v637
    %646 = vst [vmem:[#allocation5 + $0x38] sm:$0xff] %v638
    // Predicated region
    $region22: #{tpu_custom_call.1} parent=1 // pred_check
      _
    $region23: #{tpu_custom_call.1} parent=1 // pred_check_branch
      %648 = sbr.rel (0) target = $region25
    $region24: #{tpu_custom_call.1} parent=1 // pred_region
      %650 = vsyncadd [#allocation4], 0
      %s651 = sshll.u32 [#allocation5], 4
      %s652 = int_to_ptr.vmem [resolvable:$true] %s651
      %s653 = sshll.u32 %s4, 4
      %s654 = int_to_ptr.hbm [resolvable:$true] %s653
      %659 = dma.vmem_to_hbm [thread:$0]  %s652, 1024, %s654, [#allocation4], 128, 128, 8
    $region25: #{tpu_custom_call.1} parent=1 // pred_fallthru
      _
    // Predicated region
    $region26: #{tpu_custom_call.1} parent=1 // pred_check
      _
    $region27: #{tpu_custom_call.1} parent=1 // pred_check_branch
      %661 = sbr.rel (0) target = $region29
    $region28: #{tpu_custom_call.1} parent=1 // pred_region
      %663 = dma.done [#allocation4], 1024
    $region29: #{tpu_custom_call.1} parent=1 // pred_fallthru
      _
    %664 = vsyncpa [#allocation3], 1
    %665 = vsyncpa [#allocation4], 1

</llo_original>
